<compile_context>
chip_gen: v6e
topology: v6e:2x2x1
jax: 0.10.0
libtpu: 0.0.40
codegen_flags: <defaults>
</compile_context>

<pallas_src>
import jax
import jax.numpy as jnp
from jax.experimental import pallas as pl
from jax.experimental.pallas import tpu as pltpu

_TARGET_X_TILE_BYTES = 4 << 20   # ~4 MiB of x per tile (mem-bound: fewer steps)
_MAX_TC = 512                    # lane-dense output tiles (multiple of 128)
_MAX_TK = 4096                   # contain the lane-padded (tk,128) evals block
_VMEM_LIMIT_BYTES = 32 << 20     # explicit: > v5e's 16 MiB default, <= v7x phys
_PALLAS_MIN_ELEMS = 1 << 20      # below ~1M elems XLA fusion wins
_MIN_LANE_C = 128                # C below this -> masked stores; use XLA


def laplacian_block_kernel(x_ref, evals_ref, t_ref, o_ref):
    # x_ref/o_ref: (TK, TC) in x.dtype; evals_ref: (TK, 1) f32; t_ref: (1, TC) f32.
    # NOTE: edge tiles (K or C not a multiple of the tile) read padded/garbage
    # evals/t/x in the out-of-range lanes; exp() may produce inf/NaN there, but
    # those lanes are masked on store and there is no reduction, so it is
    # benign.  Do NOT add a reduction over the tile without masking first.
    # Coefficient math in f32 (exp lowers to the EUP slot); single downcast of
    # the final product (no-op for f32 inputs).
    coefs = jnp.exp(-evals_ref[...] * jnp.abs(t_ref[...]))          # (TK, TC) f32
    o_ref[...] = (coefs * x_ref[...].astype(jnp.float32)).astype(o_ref.dtype)


def _reference(x, evals, diffusion_time):
    """Plain-JAX reference / small-shape fallback (matches the PyTorch module)."""
    coefs = jnp.exp(
        -evals.astype(jnp.float32)[:, None]
        * jnp.abs(diffusion_time.astype(jnp.float32))[None, :])
    return (coefs * x.astype(jnp.float32)).astype(x.dtype)


def _round_up(v, m):
    return ((v + m - 1) // m) * m


def _choose_tiles(K, C, itemsize):
    """Bytes-targeted (sub,128)-aligned tile sizes; >=2 blocks when possible."""
    sub = {1: 32, 2: 16}.get(itemsize, 8)        # sublane multiple for dtype
    # Channel tile: full extent when it fits, else 512 (lane-dense stores).
    tc = C if C <= _MAX_TC else _MAX_TC
    tc_pad = _round_up(tc, 128)                  # VMEM lane padding
    # K tile from the byte target (bf16 automatically gets 2x the rows of f32).
    tk = max(sub, (_TARGET_X_TILE_BYTES // (tc_pad * itemsize)) // sub * sub)
    tk = min(tk, _MAX_TK)
    if K <= tk:
        tk = K                                   # full extent is always legal
    # Ensure the grid has >=2 blocks so v7x can shard across its 2 TensorCores
    # (prefer splitting K so tc stays lane-dense); negligible cost elsewhere.
    if pl.cdiv(K, tk) * pl.cdiv(C, tc) < 2:
        if K >= 2 * sub:
            tk = _round_up(pl.cdiv(K, 2), sub)
        elif C >= 256:
            tc = _round_up(pl.cdiv(C, 2), 128)
    return tk, tc


def laplacian_block(x, evals, diffusion_time, *, use_pallas=None):
    """Pallas TPU implementation of LaplacianBlock.forward.

    Args:
      x: (K, C) spectral-domain values.
      evals: (K,) eigenvalues.
      diffusion_time: (C,) learned per-channel diffusion times.
      use_pallas: force (True) / forbid (False) the Pallas path; None = auto
        (Pallas only for large, lane-dense problems; otherwise fused XLA).
    Returns:
      (K, C) transformed values: exp(-evals[:, None] * |t|[None, :]) * x
    """
    K, C = x.shape
    if diffusion_time.shape[0] != C:
        raise ValueError(
            "Tensor has wrong shape = {}. Last dim shape should have number of "
            "channels = {}".format(x.shape, diffusion_time.shape[0]))

    if use_pallas is None:
        # Small problems: the pallas_call is pure custom-call/DMA overhead and
        # blocks fusion.  Narrow C (<128): output stores would be masked
        # (vst.msk, ~4.5x store-path penalty) -> keep those in XLA too.
        use_pallas = (K * C) >= _PALLAS_MIN_ELEMS and C >= _MIN_LANE_C
    if not use_pallas:
        return _reference(x, evals, diffusion_time)

    itemsize = jnp.dtype(x.dtype).itemsize
    tk, tc = _choose_tiles(K, C, itemsize)
    # K outer / C inner: the evals block index (i, 0) is constant over the
    # inner loop, so its (lane-padded) column DMA is deduped across C steps.
    grid = (pl.cdiv(K, tk), pl.cdiv(C, tc))

    # Broadcast operands stay float32 (precision) — do NOT cast to x.dtype.
    evals_2d = evals.reshape(K, 1).astype(jnp.float32)
    t_2d = diffusion_time.reshape(1, C).astype(jnp.float32)

    cost = pl.CostEstimate(
        flops=2 * K * C,                 # coef mul + output mul
        transcendentals=K * C,           # exp
        bytes_accessed=2 * K * C * itemsize + 4 * (K + C))

    return pl.pallas_call(
        laplacian_block_kernel,
        out_shape=jax.ShapeDtypeStruct((K, C), x.dtype),
        grid_spec=pltpu.PrefetchScalarGridSpec(
            num_scalar_prefetch=0,
            grid=grid,
            in_specs=[
                pl.BlockSpec((tk, tc), lambda i, j: (i, j)),   # x tile
                pl.BlockSpec((tk, 1), lambda i, j: (i, 0)),    # evals column
                pl.BlockSpec((1, tc), lambda i, j: (0, j)),    # |t| row
            ],
            out_specs=pl.BlockSpec((tk, tc), lambda i, j: (i, j)),
        ),
        compiler_params=pltpu.CompilerParams(
            dimension_semantics=("parallel", "parallel"),
            vmem_limit_bytes=_VMEM_LIMIT_BYTES),
        cost_estimate=cost,
    )(x, evals_2d, t_2d)


if __name__ == "__main__":
    key = jax.random.PRNGKey(0)
    kx, ke, kx2, ke2, kx3, ke3 = jax.random.split(key, 6)

    # --- 1) Small shapes matching the module (K spectral modes, C channels),
    #        forcing the Pallas path (full-extent single block, C < 128 is
    #        correctness-only here; auto-dispatch would use XLA).
    K, C = 8, 32
    x = jax.random.normal(kx, (K, C), dtype=jnp.float32)
    evals = jnp.abs(jax.random.normal(ke, (K,), dtype=jnp.float32))
    diffusion_time = jnp.full((C,), 0.0001, dtype=jnp.float32)  # constant_(t, 1e-4)

    out = laplacian_block(x, evals, diffusion_time, use_pallas=True)
    out = jax.block_until_ready(out)
    ref = _reference(x, evals, diffusion_time)
    assert out.shape == (K, C)
    assert jnp.allclose(out, ref, atol=1e-6, rtol=1e-6)

    # Auto-dispatch path (tiny / narrow shapes fall back to fused XLA) agrees.
    out_auto = jax.block_until_ready(laplacian_block(x, evals, diffusion_time))
    assert jnp.allclose(out_auto, ref, atol=1e-6, rtol=1e-6)

    # --- 2) Multi-tile f32 case via auto-dispatch: grid (2, 2) with a masked
    #        edge block in C (C not a multiple of tc).
    K2, C2 = 4096, 640
    x2 = jax.random.normal(kx2, (K2, C2), dtype=jnp.float32)
    evals2 = jnp.abs(jax.random.normal(ke2, (K2,), dtype=jnp.float32))
    t2 = jnp.full((C2,), 0.0001, dtype=jnp.float32)
    out2 = jax.block_until_ready(laplacian_block(x2, evals2, t2))
    ref2 = _reference(x2, evals2, t2)
    assert jnp.allclose(out2, ref2, atol=1e-6, rtol=1e-6)

    # --- 3) bf16 input: coefficient math stays in f32 inside the kernel; the
    #        single-block grid is split along K (>=2 blocks for 2-TC sharding).
    K3, C3 = 2048, 512
    x3 = jax.random.normal(kx3, (K3, C3), dtype=jnp.float32).astype(jnp.bfloat16)
    evals3 = jnp.abs(jax.random.normal(ke3, (K3,), dtype=jnp.float32))
    t3 = jnp.full((C3,), 0.0001, dtype=jnp.float32)
    out3 = jax.block_until_ready(
        laplacian_block(x3, evals3, t3, use_pallas=True))
    ref3 = _reference(x3, evals3, t3)
    assert out3.dtype == jnp.bfloat16
    assert jnp.allclose(out3.astype(jnp.float32), ref3.astype(jnp.float32),
                        atol=2e-2, rtol=2e-2)

    print("KERNEL_OK")
</pallas_src>

<mosaic_0001>
module attributes {stable_mosaic.version = 11 : i64} {
  func.func @laplacian_block_kernel(%arg0: i32, %arg1: i32, %arg2: memref<8x32xf32, #tpu.memory_space<vmem>>, %arg3: memref<8x1xf32, #tpu.memory_space<vmem>>, %arg4: memref<1x32xf32, #tpu.memory_space<vmem>>, %arg5: memref<8x32xf32, #tpu.memory_space<vmem>>) attributes {dimension_semantics = [#tpu.dimension_semantics<parallel>, #tpu.dimension_semantics<parallel>], iteration_bounds = array<i64: 1, 1>, scalar_prefetch = 0 : i64, scratch_operands = 0 : i64, tpu.core_type = #tpu.core_type<tc>, window_params = [{transform_indices = @transform_0, window_bounds = array<i64: 8, 32>}, {transform_indices = @transform_1, window_bounds = array<i64: 8, 1>}, {transform_indices = @transform_2, window_bounds = array<i64: 1, 32>}, {transform_indices = @transform_3, window_bounds = array<i64: 8, 32>}]} {
    %c0 = arith.constant 0 : index
    %c0_0 = arith.constant 0 : index
    %0 = vector.load %arg3[%c0, %c0_0] : memref<8x1xf32, #tpu.memory_space<vmem>>, vector<8x1xf32>
    %cst = arith.constant 0.000000e+00 : f32
    %1 = vector.broadcast %cst : f32 to vector<8x1xf32>
    %2 = arith.subf %1, %0 : vector<8x1xf32>
    %c0_1 = arith.constant 0 : index
    %c0_2 = arith.constant 0 : index
    %3 = vector.load %arg4[%c0_1, %c0_2] : memref<1x32xf32, #tpu.memory_space<vmem>>, vector<1x32xf32>
    %4 = math.absf %3 : vector<1x32xf32>
    %5 = vector.broadcast %2 : vector<8x1xf32> to vector<8x32xf32>
    %6 = vector.broadcast %4 : vector<1x32xf32> to vector<8x32xf32>
    %7 = arith.mulf %5, %6 : vector<8x32xf32>
    %8 = math.exp %7 : vector<8x32xf32>
    %c0_3 = arith.constant 0 : index
    %c0_4 = arith.constant 0 : index
    %9 = vector.load %arg2[%c0_3, %c0_4] : memref<8x32xf32, #tpu.memory_space<vmem>>, vector<8x32xf32>
    %10 = arith.mulf %8, %9 : vector<8x32xf32>
    %c0_5 = arith.constant 0 : index
    %c0_6 = arith.constant 0 : index
    %11 = vector.load %arg5[%c0_5, %c0_6] : memref<8x32xf32, #tpu.memory_space<vmem>>, vector<8x32xf32>
    tpu.vector_store %arg5[%c0_5, %c0_6], %10 {strides = array<i32>} : memref<8x32xf32, #tpu.memory_space<vmem>>, vector<8x32xf32>,
    return
  }
  func.func @transform_0(%arg0: i32, %arg1: i32) -> (i32, i32) {
    %c0_i32 = arith.constant 0 : i32
    return %arg0, %arg1 : i32, i32
  }
  func.func @transform_1(%arg0: i32, %arg1: i32) -> (i32, i32) {
    %c0_i32 = arith.constant 0 : i32
    %c0_i32_0 = arith.constant 0 : i32
    return %arg0, %c0_i32 : i32, i32
  }
  func.func @transform_2(%arg0: i32, %arg1: i32) -> (i32, i32) {
    %c0_i32 = arith.constant 0 : i32
    %c0_i32_0 = arith.constant 0 : i32
    return %c0_i32, %arg1 : i32, i32
  }
  func.func @transform_3(%arg0: i32, %arg1: i32) -> (i32, i32) {
    %c0_i32 = arith.constant 0 : i32
    return %arg0, %arg1 : i32, i32
  }
}

</mosaic_0001>

<llo_original>
// kernel: tpu_custom_call.1
$region0: #{tpu_custom_call.1}
  #allocation0 [shape = 'u32[]', space=smem, size = 0x4, offset = 0x4, fixed_abs, tag = 'smem constant byte address 0x4 - core index']
  #allocation1 [shape = 'u32[144,128]{1,0:T(1,128)}', space=vmem, size = 0x12000, scoped, tag = 'internal scratch']
  %s0 = inlined_call_operand.vmem [shape: f32[8,32], index: 0, kind: input, shape index: {}]
  %s1 = inlined_call_operand.vmem [shape: f32[8,1], index: 1, kind: input, shape index: {}]
  %s2 = inlined_call_operand.vmem [shape: f32[1,32], index: 2, kind: input, shape index: {}]
  %s3 = inlined_call_operand.hbm [shape: f32[8,32], index: 3, kind: output, shape index: {}]
  %s4 = sld [smem:[#allocation0]]
  $region22: #{tpu_custom_call.1} parent=0
    _
  %s6 = ssub.s32 1, %s4
  %s7 = scalar_select 0, %s6, %s4
  $region1: #{tpu_custom_call.1} parent=0
    #allocation2 [shape = 'u8[4096]{0}', space=vmem, size = 0x1000, scoped, tag = 'output window, operand 0, single buffered']
    #allocation3 [shape = 's32[1]{0}', space=sflag, size = 0x4, scoped, tag = 'scoped memory for tpu_custom_call.1']
    %8 = vsyncpa [#allocation3], 0
    // Predicated region
    $region2: #{tpu_custom_call.1} parent=1 // pred_check
      _
    $region3: #{tpu_custom_call.1} parent=1 // pred_check_branch
      %10 = sbr.rel (0) target = $region5
    $region4: #{tpu_custom_call.1} parent=1 // pred_region
      _
    $region5: #{tpu_custom_call.1} parent=1 // pred_fallthru
      _
    // Predicated region
    $region6: #{tpu_custom_call.1} parent=1 // pred_check
      _
    $region7: #{tpu_custom_call.1} parent=1 // pred_check_branch
      %12 = sbr.rel (0) target = $region9
    $region8: #{tpu_custom_call.1} parent=1 // pred_region
      _
    $region9: #{tpu_custom_call.1} parent=1 // pred_fallthru
      _
    // Predicated region
    $region10: #{tpu_custom_call.1} parent=1 // pred_check
      _
    $region11: #{tpu_custom_call.1} parent=1 // pred_check_branch
      %14 = sbr.rel (0) target = $region13
    $region12: #{tpu_custom_call.1} parent=1 // pred_region
      _
    $region13: #{tpu_custom_call.1} parent=1 // pred_fallthru
      _
    %v15 = vld [vmem:[%s1] sm:$0xff]
    %v16 = vsub.f32 0.0, %v15
    %v17 = vld [vmem:[%s2] sm:$0x1]
    %v18 = vand.u32 2147483647, %v17
    %20 = vset.pattern.permute.xlu0 0
    %21 = vperm.xlu0 %20, %v16
    %v22 = vpop.permute.xlu0 %21
    %v25 = vlaneseq
    %v26 = vshrl.u32 %v25, 7
    %v27 = vsub.s32 0, %v26
    %v28 = vrot.slane %v18, %v27
    %v30 = vmul.f32 %v22, %v28
    %v31 = vmul.f32 %v30, 1.442695
    %v32 = vpow.pop %v31
    %v33 = vld [vmem:[%s0] sm:$0xff]
    %v34 = vmul.f32 %v32, %v33
    %vm35 = vcmask 261120
    %36 = vst.msk [vmem:[#allocation2] sm:$0xff] %vm35, %v34
    // Predicated region
    $region14: #{tpu_custom_call.1} parent=1 // pred_check
      _
    $region15: #{tpu_custom_call.1} parent=1 // pred_check_branch
      %38 = sbr.rel (0) target = $region17
    $region16: #{tpu_custom_call.1} parent=1 // pred_region
      %s40 = ssub.s32 128, 128
      %41 = vsyncadd [#allocation3], %s40
      %s43 = sshll.u32 [#allocation2], 4
      %s44 = int_to_ptr.vmem [resolvable:$true] %s43
      %46 = dma.vmem_to_hbm [thread:$0]  %s44, 128, %s3, [#allocation3]
    $region17: #{tpu_custom_call.1} parent=1 // pred_fallthru
      _
    // Predicated region
    $region18: #{tpu_custom_call.1} parent=1 // pred_check
      _
    $region19: #{tpu_custom_call.1} parent=1 // pred_check_branch
      %48 = sbr.rel (0) target = $region21
    $region20: #{tpu_custom_call.1} parent=1 // pred_region
      %49 = dma.done [#allocation3], 128
    $region21: #{tpu_custom_call.1} parent=1 // pred_fallthru
      _
    %50 = vsyncpa [#allocation3], 1

</llo_original>
